<compile_context>
chip_gen: v5e
topology: v5e:2x2
jax: 0.10.0
libtpu: 0.0.40
codegen_flags: <defaults>
</compile_context>

<pallas_src>
import functools

import jax
import jax.numpy as jnp
from jax import lax
from jax.experimental import pallas as pl
from jax.experimental.pallas import tpu as pltpu


def _round_up(x, m):
    return ((x + m - 1) // m) * m


def _sm_kernel(nrow_ref, ncol_ref, s_ref, o_ref, *, alpha, tr):
    # Scalar-prefetch refs (SMEM): per-batch valid row / column counts.
    b = pl.program_id(0)
    r = pl.program_id(1)
    n_rows = nrow_ref[b]
    n_cols = ncol_ref[b]
    row0 = r * tr

    TR, C = o_ref.shape  # kernel sees 2-D (TR, Cp) thanks to pl.Squeezed()

    # Narrow masks; let jnp.where broadcast them over the (TR, Cp) tile.
    row_ids = row0 + lax.broadcasted_iota(jnp.int32, (TR, 1), 0)
    col_ids = lax.broadcasted_iota(jnp.int32, (1, C), 1)
    row_valid = row_ids < n_rows
    col_valid = col_ids < n_cols

    @pl.when(row0 < n_rows)
    def _compute():
        s = s_ref[...].astype(jnp.float32)
        # Softmax over valid columns only (invalid columns -> -inf logits).
        logits = jnp.where(col_valid, jnp.float32(alpha) * s, -jnp.inf)
        mx = jnp.max(logits, axis=-1, keepdims=True)
        e = jnp.exp(logits - mx)
        e = jnp.where(col_valid, e, jnp.float32(0.0))          # kills NaNs if n_cols==0
        denom = jnp.sum(e, axis=-1, keepdims=True)
        denom = jnp.maximum(denom, jnp.float32(1e-30))          # guard n_cols==0
        sm_vals = e * pl.reciprocal(denom, approx=False)
        # Invalid cols are already 0 (e was masked); only rows need masking here.
        o_ref[...] = jnp.where(row_valid, sm_vals, jnp.float32(0.0)).astype(o_ref.dtype)

    @pl.when(row0 >= n_rows)
    def _all_masked():
        # Entire row tile is past nrow_gt[b]: skip compute, just write zeros.
        o_ref[...] = jnp.zeros_like(o_ref)


def sm_forward(s, nrow_gt, ncol_gt=None, alpha=200):
    """Pallas TPU implementation of the `sm` module forward pass.

    s       : (B, R, C) float32/bfloat16
    nrow_gt : (B,) int   — valid row counts per batch element
    ncol_gt : (B,) int or None — valid column counts per batch element
    """
    B, R, C = s.shape
    out_dtype = s.dtype

    nrow_gt = jnp.minimum(nrow_gt.astype(jnp.int32), R)
    if ncol_gt is None:
        ncol_gt = jnp.full((B,), C, dtype=jnp.int32)
    else:
        ncol_gt = jnp.minimum(ncol_gt.astype(jnp.int32), C)

    # Lane-dense, (8,128)-aligned padded problem.
    Cp = _round_up(C, 128)

    # Row tile: multiple of 8, capped at 1024, and sized so 4 double-buffered
    # blocks (2 in + 2 out) stay well inside v5e's 16 MiB scoped-VMEM default
    # (conservatively accounted at 4 B/elem).
    budget_per_buf = 3 * 1024 * 1024
    tr_max = max(8, (budget_per_buf // (Cp * 4)) // 8 * 8)
    TR = int(min(1024, tr_max, _round_up(R, 8)))
    Rp = _round_up(R, TR)

    s_p = s
    if Rp != R or Cp != C:
        s_p = jnp.pad(s, ((0, 0), (0, Rp - R), (0, Cp - C)))

    kernel = functools.partial(_sm_kernel, alpha=alpha, tr=TR)

    grid_spec = pltpu.PrefetchScalarGridSpec(
        num_scalar_prefetch=2,          # nrow_gt, ncol_gt land in SMEM
        grid=(B, Rp // TR),
        in_specs=[
            pl.BlockSpec((pl.Squeezed(), TR, Cp),
                         lambda b, r, nrow, ncol: (b, r, 0)),
        ],
        out_specs=pl.BlockSpec((pl.Squeezed(), TR, Cp),
                               lambda b, r, nrow, ncol: (b, r, 0)),
    )

    out_p = pl.pallas_call(
        kernel,
        out_shape=jax.ShapeDtypeStruct((B, Rp, Cp), out_dtype),
        grid_spec=grid_spec,
        compiler_params=pltpu.CompilerParams(
            dimension_semantics=("parallel", "parallel")),
    )(nrow_gt, ncol_gt, s_p)

    if Rp != R or Cp != C:
        out_p = out_p[:, :R, :C]
    return out_p


def _sm_reference(s, nrow_gt, ncol_gt=None, alpha=200):
    """Pure-JAX reference mirroring the PyTorch loop."""
    B, R, C = s.shape
    out = jnp.zeros_like(s)
    for b in range(B):
        n = int(nrow_gt[b])
        m = C if ncol_gt is None else int(ncol_gt[b])
        block = jax.nn.softmax(alpha * s[b, :n, :m].astype(jnp.float32), axis=-1)
        out = out.at[b, :n, :m].set(block.astype(s.dtype))
    return out


if __name__ == "__main__":
    key = jax.random.PRNGKey(0)
    k1, k2 = jax.random.split(key)

    # Case 1: small (B, R, C) = (2, 8, 16) — exercises column padding to 128.
    B, R, C = 2, 8, 16
    s = jax.random.uniform(k1, (B, R, C), dtype=jnp.float32)
    nrow_gt = jnp.array([5, 8], dtype=jnp.int32)
    ncol_gt = jnp.array([12, 16], dtype=jnp.int32)

    out = jax.block_until_ready(sm_forward(s, nrow_gt, ncol_gt, alpha=200))
    ref = _sm_reference(s, nrow_gt, ncol_gt, alpha=200)
    assert jnp.allclose(out, ref, atol=1e-5, rtol=1e-5), "mismatch (ncol_gt case)"

    # Case 2: ncol_gt is None.
    out2 = jax.block_until_ready(sm_forward(s, nrow_gt, None, alpha=200))
    ref2 = _sm_reference(s, nrow_gt, None, alpha=200)
    assert jnp.allclose(out2, ref2, atol=1e-5, rtol=1e-5), "mismatch (None case)"

    # Case 3: non-aligned R and C (row + column padding, partial masks).
    B2, R2, C2 = 2, 20, 200
    s3 = jax.random.uniform(k2, (B2, R2, C2), dtype=jnp.float32)
    nrow3 = jnp.array([15, 20], dtype=jnp.int32)
    ncol3 = jnp.array([100, 200], dtype=jnp.int32)
    out3 = jax.block_until_ready(sm_forward(s3, nrow3, ncol3, alpha=200))
    ref3 = _sm_reference(s3, nrow3, ncol3, alpha=200)
    assert jnp.allclose(out3, ref3, atol=1e-5, rtol=1e-5), "mismatch (padded case)"

    print("KERNEL_OK")
</pallas_src>

<mosaic_0001>
module attributes {stable_mosaic.version = 11 : i64} {
  func.func @_sm_kernel(%arg0: i32, %arg1: i32, %arg2: memref<2xi32, #tpu.memory_space<smem>>, %arg3: memref<2xi32, #tpu.memory_space<smem>>, %arg4: memref<1x8x128xf32, #tpu.memory_space<vmem>>, %arg5: memref<1x8x128xf32, #tpu.memory_space<vmem>>) attributes {dimension_semantics = [#tpu.dimension_semantics<parallel>, #tpu.dimension_semantics<parallel>], iteration_bounds = array<i64: 2, 1>, scalar_prefetch = 2 : i64, scratch_operands = 0 : i64, tpu.core_type = #tpu.core_type<tc>, window_params = [{transform_indices = @transform_0, window_bounds = array<i64: 1, 8, 128>}, {transform_indices = @transform_1, window_bounds = array<i64: 1, 8, 128>}]} {
    %0 = arith.index_cast %arg0 : i32 to index
    %1 = memref.load %arg2[%0] : memref<2xi32, #tpu.memory_space<smem>>
    %2 = arith.index_cast %arg0 : i32 to index
    %3 = memref.load %arg3[%2] : memref<2xi32, #tpu.memory_space<smem>>
    %c8_i32 = arith.constant 8 : i32
    %4 = arith.muli %arg1, %c8_i32 : i32
    %5 = tpu.iota {dimensions = array<i32: 0>} : vector<8x1xi32>
    %6 = vector.broadcast %4 : i32 to vector<8x1xi32>
    %7 = arith.addi %6, %5 : vector<8x1xi32>
    %8 = tpu.iota {dimensions = array<i32: 1>} : vector<1x128xi32>
    %9 = vector.broadcast %1 : i32 to vector<8x1xi32>
    %10 = arith.cmpi slt, %7, %9 : vector<8x1xi32>
    %11 = vector.broadcast %3 : i32 to vector<1x128xi32>
    %12 = arith.cmpi slt, %8, %11 : vector<1x128xi32>
    %13 = arith.cmpi slt, %4, %1 : i32
    %14 = arith.extui %13 : i1 to i32
    %c0_i32 = arith.constant 0 : i32
    %15 = arith.cmpi ne, %14, %c0_i32 : i32
    scf.if %15 {
      %c0 = arith.constant 0 : index
      %c0_1 = arith.constant 0 : index
      %c0_2 = arith.constant 0 : index
      %19 = vector.load %arg4[%c0, %c0_1, %c0_2] : memref<1x8x128xf32, #tpu.memory_space<vmem>>, vector<1x8x128xf32>
      %20 = vector.shape_cast %19 : vector<1x8x128xf32> to vector<8x128xf32>
      %cst = arith.constant 2.000000e+02 : f32
      %21 = vector.broadcast %cst : f32 to vector<8x128xf32>
      %22 = arith.mulf %21, %20 : vector<8x128xf32>
      %cst_3 = arith.constant 0xFF800000 : f32
      %23 = vector.shape_cast %12 : vector<1x128xi1> to vector<1x128xi1>
      %24 = vector.broadcast %23 : vector<1x128xi1> to vector<8x128xi1>
      %25 = vector.broadcast %cst_3 : f32 to vector<8x128xf32>
      %26 = arith.select %24, %22, %25 : vector<8x128xi1>, vector<8x128xf32>
      %cst_4 = arith.constant dense<0xFF800000> : vector<8xf32>
      %27 = vector.multi_reduction <maximumf>, %26, %cst_4 [1] : vector<8x128xf32> to vector<8xf32>
      %28 = vector.shape_cast %27 : vector<8xf32> to vector<8x1xf32>
      %29 = vector.broadcast %28 : vector<8x1xf32> to vector<8x128xf32>
      %30 = arith.subf %26, %29 : vector<8x128xf32>
      %31 = math.exp %30 : vector<8x128xf32>
      %cst_5 = arith.constant 0.000000e+00 : f32
      %32 = vector.shape_cast %12 : vector<1x128xi1> to vector<1x128xi1>
      %33 = vector.broadcast %32 : vector<1x128xi1> to vector<8x128xi1>
      %34 = vector.broadcast %cst_5 : f32 to vector<8x128xf32>
      %35 = arith.select %33, %31, %34 : vector<8x128xi1>, vector<8x128xf32>
      %cst_6 = arith.constant dense<0.000000e+00> : vector<8xf32>
      %36 = vector.multi_reduction <add>, %35, %cst_6 [1] : vector<8x128xf32> to vector<8xf32>
      %37 = vector.shape_cast %36 : vector<8xf32> to vector<8x1xf32>
      %cst_7 = arith.constant 1.000000e-30 : f32
      %38 = vector.broadcast %cst_7 : f32 to vector<8x1xf32>
      %39 = arith.maximumf %37, %38 : vector<8x1xf32>
      %40 = tpu.reciprocal %39 : vector<8x1xf32> -> vector<8x1xf32>
      %41 = vector.broadcast %40 : vector<8x1xf32> to vector<8x128xf32>
      %42 = arith.mulf %35, %41 : vector<8x128xf32>
      %cst_8 = arith.constant 0.000000e+00 : f32
      %43 = vector.shape_cast %10 : vector<8x1xi1> to vector<8x1xi1>
      %44 = vector.broadcast %43 : vector<8x1xi1> to vector<8x128xi1>
      %45 = vector.broadcast %cst_8 : f32 to vector<8x128xf32>
      %46 = arith.select %44, %42, %45 : vector<8x128xi1>, vector<8x128xf32>
      %c0_9 = arith.constant 0 : index
      %c0_10 = arith.constant 0 : index
      %c0_11 = arith.constant 0 : index
      %47 = vector.load %arg5[%c0_9, %c0_10, %c0_11] : memref<1x8x128xf32, #tpu.memory_space<vmem>>, vector<1x8x128xf32>
      %48 = vector.shape_cast %47 : vector<1x8x128xf32> to vector<8x128xf32>
      %49 = vector.shape_cast %46 : vector<8x128xf32> to vector<1x8x128xf32>
      tpu.vector_store %arg5[%c0_9, %c0_10, %c0_11], %49 {strides = array<i32>} : memref<1x8x128xf32, #tpu.memory_space<vmem>>, vector<1x8x128xf32>,
    } else {
    }
    %16 = arith.cmpi sge, %4, %1 : i32
    %17 = arith.extui %16 : i1 to i32
    %c0_i32_0 = arith.constant 0 : i32
    %18 = arith.cmpi ne, %17, %c0_i32_0 : i32
    scf.if %18 {
      %cst = arith.constant 0.000000e+00 : f32
      %19 = vector.broadcast %cst : f32 to vector<8x128xf32>
      %c0 = arith.constant 0 : index
      %c0_1 = arith.constant 0 : index
      %c0_2 = arith.constant 0 : index
      %20 = vector.load %arg5[%c0, %c0_1, %c0_2] : memref<1x8x128xf32, #tpu.memory_space<vmem>>, vector<1x8x128xf32>
      %21 = vector.shape_cast %20 : vector<1x8x128xf32> to vector<8x128xf32>
      %22 = vector.shape_cast %19 : vector<8x128xf32> to vector<1x8x128xf32>
      tpu.vector_store %arg5[%c0, %c0_1, %c0_2], %22 {strides = array<i32>} : memref<1x8x128xf32, #tpu.memory_space<vmem>>, vector<1x8x128xf32>,
    } else {
    }
    return
  }
  func.func @transform_0(%arg0: i32, %arg1: i32, %arg2: memref<2xi32, #tpu.memory_space<smem>>, %arg3: memref<2xi32, #tpu.memory_space<smem>>) -> (i32, i32, i32) {
    %c0_i32 = arith.constant 0 : i32
    %c0_i32_0 = arith.constant 0 : i32
    return %arg0, %arg1, %c0_i32 : i32, i32, i32
  }
  func.func @transform_1(%arg0: i32, %arg1: i32, %arg2: memref<2xi32, #tpu.memory_space<smem>>, %arg3: memref<2xi32, #tpu.memory_space<smem>>) -> (i32, i32, i32) {
    %c0_i32 = arith.constant 0 : i32
    %c0_i32_0 = arith.constant 0 : i32
    return %arg0, %arg1, %c0_i32 : i32, i32, i32
  }
}

</mosaic_0001>

<llo_original>
// kernel: tpu_custom_call.1
$region0: #{tpu_custom_call.1}
  #allocation0 [shape = 'u32[]', space=smem, size = 0x4, offset = 0x4, fixed_abs, tag = 'smem constant byte address 0x4 - core index']
  #allocation1 [shape = 'u32[72,128]{1,0:T(1,128)}', space=vmem, size = 0x9000, scoped, tag = 'internal scratch']
  #allocation2 [shape = 's32[1]{0}', space=sflag, size = 0x4, scoped, tag = 'scoped memory for tpu_custom_call.1']
  #allocation3 [shape = 'u8[512]{0}', space=smem, size = 0x200, scoped, tag = 'prefetched SMEM operand 0']
  #allocation4 [shape = 'u8[512]{0}', space=smem, size = 0x200, scoped, tag = 'prefetched SMEM operand 1']
  %s0 = inlined_call_operand.hbm [shape: s32[2], index: 0, kind: input, shape index: {}]
  %s1 = inlined_call_operand.hbm [shape: s32[2], index: 1, kind: input, shape index: {}]
  %s2 = inlined_call_operand.hbm [shape: f32[2,8,128], index: 2, kind: input, shape index: {}]
  %s3 = inlined_call_operand.hbm [shape: f32[2,8,128], index: 3, kind: output, shape index: {}]
  %s4 = sld [smem:[#allocation0]]
  $region49: #{tpu_custom_call.1} parent=0
    _
  %s6 = ssub.s32 1, %s4
  %s7 = scalar_select 0, %s6, %s4
  %s9 = sshll.u32 %s0, 4
  %s10 = int_to_ptr.hbm [resolvable:$true] %s9
  %12 = dma.hbm_to_smem %s10, 16, [#allocation3], [#allocation2]
  %s14 = sshll.u32 %s1, 4
  %s15 = int_to_ptr.hbm [resolvable:$true] %s14
  %17 = dma.hbm_to_smem %s15, 16, [#allocation4], [#allocation2]
  %19 = dma.done [#allocation2], 32
  %20 = sfence
  $region1: #{tpu_custom_call.1} parent=0
    #allocation5 [shape = 'u8[8192]{0}', space=vmem, size = 0x2000, scoped, tag = 'input window, operand 2']
    #allocation6 [shape = 's32[2]{0}', space=sflag, size = 0x8, scoped, tag = 'scoped memory for tpu_custom_call.1']
    #allocation7 [shape = 's32[2]{0}', space=sflag, size = 0x8, scoped, tag = 'scoped memory for tpu_custom_call.1']
    #allocation8 [shape = 'u8[8192]{0}', space=vmem, size = 0x2000, scoped, tag = 'output window, operand 0']
    %21 = vsyncpa [#allocation6], 0
    %s22 = scalar_lea.sflag [#allocation6], 1
    %23 = vsyncpa %s22, 0
    %24 = vsyncpa [#allocation7], 0
    %s25 = scalar_lea.sflag [#allocation7], 1
    %26 = vsyncpa %s25, 0
    loop: start=0, step=1, limit=4
    $region2: #{tpu_custom_call.1} parent=1 // loop_pre_header
      _
    $region3: #{tpu_custom_call.1} parent=1 // loop_header
      %s28 = sphi 0, %s32
      %p29 = scmp.ge.s32.totalorder %s28, 4
      %s35 = sphi 0, %s47
      %s36 = sphi 0, %s43
      %s37 = sphi 0, %s35
      %s38 = sphi 0, %s36
      %s39 = sphi 0, %s37
      %s40 = sphi 0, %s38
      %s52 = sphi 0, %s54
      %s55 = sphi 0, %s52
      %s56 = sphi 0, %s55
      %s72 = sphi 0, %s56
      %s80 = sphi 0, %s82
      %s83 = sphi 0, %s80
      %s84 = sphi 0, %s83
      %s100 = sphi 0, %s84
    $region4: #{tpu_custom_call.1} parent=1 // loop_header_branch
      %31 = sbr.rel (%p29) target = $region8
    $region5: #{tpu_custom_call.1} parent=1 // loop_body
      %s33 = ssub.s32 %s28, 1
      %s34 = ssub.s32 %s28, 2
      %s41 = sadd.s32 1, %s36
      %p42 = scmp.ge.s32.totalorder %s41, 1
      %s43 = scalar_select %p42, 0, %s41
      %s44 = sadd.s32 1, %s35
      %s45 = scalar_select %p42, %s44, %s35
      %p46 = scmp.ge.s32.totalorder %s45, 2
      %s47 = scalar_select %p46, 0, %s45
      %s48 = ssub.s32 %s35, %s47
      %s49 = ssub.s32 %s36, %s43
      %s50 = sor.u32 %s48, %s49
      %p51 = scmp.eq.s32.totalorder %s50, 0
      %s53 = sadd.s32 %s52, 1
      %s54 = scalar_select %p51, %s52, %s53
      %p57 = pneg %p51
      %p58 = scmp.eq.s32.totalorder %s28, 1
      %p59 = por %p57, %p58
      %p60 = scmp.ne.s32.totalorder %s52, %s55
      %p61 = scmp.eq.s32.totalorder %s28, 0
      %p62 = por %p60, %p61
      %p63 = scmp.ne.s32.totalorder %s52, %s55
      %p64 = scmp.eq.s32.totalorder %s33, 1
      %p65 = por %p63, %p64
      %p66 = scmp.ne.s32.totalorder %s55, %s56
      %p67 = scmp.eq.s32.totalorder %s33, 0
      %p68 = por %p66, %p67
      %p69 = scmp.ne.s32.totalorder %s55, %s56
      %p70 = scmp.eq.s32.totalorder %s34, 1
      %p71 = por %p69, %p70
      %p73 = scmp.ne.s32.totalorder %s56, %s72
      %p74 = scmp.eq.s32.totalorder %s34, 0
      %p75 = por %p73, %p74
      %s76 = ssub.s32 %s35, %s47
      %s77 = ssub.s32 %s36, %s43
      %s78 = sor.u32 %s76, %s77
      %p79 = scmp.eq.s32.totalorder %s78, 0
      %s81 = sadd.s32 %s80, 1
      %s82 = scalar_select %p79, %s80, %s81
      %p85 = pneg %p79
      %p86 = scmp.eq.s32.totalorder %s28, 1
      %p87 = por %p85, %p86
      %p88 = scmp.ne.s32.totalorder %s80, %s83
      %p89 = scmp.eq.s32.totalorder %s28, 0
      %p90 = por %p88, %p89
      %p91 = scmp.ne.s32.totalorder %s80, %s83
      %p92 = scmp.eq.s32.totalorder %s33, 1
      %p93 = por %p91, %p92
      %p94 = scmp.ne.s32.totalorder %s83, %s84
      %p95 = scmp.eq.s32.totalorder %s33, 0
      %p96 = por %p94, %p95
      %p97 = scmp.ne.s32.totalorder %s83, %s84
      %p98 = scmp.eq.s32.totalorder %s34, 1
      %p99 = por %p97, %p98
      %p101 = scmp.ne.s32.totalorder %s84, %s100
      %p102 = scmp.eq.s32.totalorder %s34, 0
      %p103 = por %p101, %p102
      %p104 = scmp.le.s32.totalorder 1, %s28
      %p105 = scmp.lt.s32.totalorder %s28, 3
      %p106 = pnand %p104, %p105
      %p107 = pneg %p106
      // Predicated region
      $region9: #{tpu_custom_call.1} parent=5 // pred_check
        _
      $region10: #{tpu_custom_call.1} parent=5 // pred_check_branch
        %109 = sbr.rel (%p106) target = $region12
      $region11: #{tpu_custom_call.1} parent=5 // pred_region
        %s110 = ssub.s32 %s28, 1
      $region12: #{tpu_custom_call.1} parent=5 // pred_fallthru
        _
      %p111 = scmp.lt.s32.totalorder %s28, 2
      // Predicated region
      $region13: #{tpu_custom_call.1} parent=5 // pred_check
        %p112 = pneg %p111
      $region14: #{tpu_custom_call.1} parent=5 // pred_check_branch
        %114 = sbr.rel (%p112) target = $region16
      $region15: #{tpu_custom_call.1} parent=5 // pred_region
        // Predicated region
        $region17: #{tpu_custom_call.1} parent=15 // pred_check
          %p115 = pneg %p62
        $region18: #{tpu_custom_call.1} parent=15 // pred_check_branch
          %117 = sbr.rel (%p115) target = $region20
        $region19: #{tpu_custom_call.1} parent=15 // pred_region
          %s118 = sand.u32 %s52, 1
          %s119 = scalar_lea.sflag [#allocation6], %s118
          %s120 = sand.u32 %s52, 1
          %s121 = smul.addr %s120, 8
          %s122 = scalar_lea.vmem [#allocation5], %s121
          %124 = vsyncadd %s119, 0
          %s125 = sadd.s32 %s36, %s35
          %s126 = smul.addr %s125, 8
          %s127 = scalar_lea.hbm %s2, %s126
          %s129 = sshll.u32 %s127, 4
          %s130 = int_to_ptr.hbm [resolvable:$true] %s129
          %s131 = sshll.u32 %s122, 4
          %s132 = int_to_ptr.vmem [resolvable:$true] %s131
          %134 = dma.hbm_to_vmem [thread:$0]  %s130, 128, %s132, %s119
        $region20: #{tpu_custom_call.1} parent=15 // pred_fallthru
          _
      $region16: #{tpu_custom_call.1} parent=5 // pred_fallthru
        _
      %p135 = scmp.le.s32.totalorder 1, %s28
      %p136 = scmp.lt.s32.totalorder %s28, 3
      %p137 = pnand %p135, %p136
      %p138 = pneg %p137
      // Predicated region
      $region21: #{tpu_custom_call.1} parent=5 // pred_check
        _
      $region22: #{tpu_custom_call.1} parent=5 // pred_check_branch
        %140 = sbr.rel (%p137) target = $region24
      $region23: #{tpu_custom_call.1} parent=5 // pred_region
        %s141 = ssub.s32 %s28, 1
        %s142 = sand.u32 %s55, 1
        %s143 = scalar_lea.sflag [#allocation6], %s142
        %s144 = sand.u32 %s55, 1
        %s145 = smul.addr %s144, 8
        %s146 = scalar_lea.vmem [#allocation5], %s145
        // Predicated region
        $region25: #{tpu_custom_call.1} parent=23 // pred_check
          %p147 = pneg %p68
        $region26: #{tpu_custom_call.1} parent=23 // pred_check_branch
          %149 = sbr.rel (%p147) target = $region28
        $region27: #{tpu_custom_call.1} parent=23 // pred_region
          %151 = dma.done %s143, 128
        $region28: #{tpu_custom_call.1} parent=23 // pred_fallthru
          _
        %s152 = sand.u32 %s55, 1
        %s153 = scalar_lea.sflag [#allocation6], %s152
        %s154 = sand.u32 %s55, 1
        %s155 = smul.addr %s154, 8
        %s156 = scalar_lea.vmem [#allocation5], %s155
        %p157 = pneg %p68
        %p158 = pneg %p65
        %p159 = pneg %p96
        %p160 = pneg %p93
        %s161 = sand.u32 %s83, 1
        %s162 = scalar_lea.sflag [#allocation7], %s161
        %s163 = sand.u32 %s83, 1
        %s164 = smul.addr %s163, 8
        %s165 = scalar_lea.vmem [#allocation8], %s164
        %s166 = sld [smem:[#allocation3 + %s37]]
        %s167 = sld [smem:[#allocation4 + %s37]]
        %s168 = smul.u32 %s38, 8
        %v169 = vlaneseq
        %v170 = vshrl.u32 %v169, 7
        %v171 = vstv %s168
        %v172 = vadd.s32 %v171, %v170
        %v173 = vlaneseq
        %v174 = vand.u32 %v173, 127
        %v175 = vstv %s166
        %vm176 = vcmp.lt.s32.totalorder %v172, %v175
        %v177 = vstv %s167
        %vm178 = vcmp.lt.s32.totalorder %v174, %v177
        %p179 = scmp.lt.s32.totalorder %s168, %s166
        // Predicated region
        $region29: #{tpu_custom_call.1} parent=23 // pred_check
          %p180 = pneg %p179
        $region30: #{tpu_custom_call.1} parent=23 // pred_check_branch
          %182 = sbr.rel (%p180) target = $region32
        $region31: #{tpu_custom_call.1} parent=23 // pred_region
          %v183 = vld [vmem:[%s146] sm:$0xff]
          %v184 = vmul.f32 %v183, 200.0
          %v185 = vsel %vm178, 1, 0
          %vm186 = vcmp.eq.s32.totalorder %v185, 1
          %v187 = vsel %vm186, %v184, -inf
          %188 = vmax.xlane.f32.xlu0 %v187
          %v189 = vpop.xlane.xlu0 %188
          %v190 = vsub.f32 %v187, %v189
          %v191 = vmul.f32 %v190, 1.442695
          %v192 = vpow.pop %v191
          %v193 = vsel %vm186, %v192, 0.0
          %194 = vadd.xlane.f32.xlu0 %v193
          %v195 = vpop.xlane.xlu0 %194
          %v196 = vmax.f32 %v195, 1e-30
          %v197 = vrcp.pop %v196
          %v198 = vmul.f32 %v196, %v197
          %v199 = vsub.f32 1.0, %v198
          %v200 = vmul.f32 %v197, %v199
          %v201 = vadd.f32 %v197, %v200
          %vm202 = vweird.f32 %v196
          %vm203 = vweird.f32 %v197
          %vm204 = vmor %vm202, %vm203
          %v205 = vsel %vm204, %v197, %v201
          %v206 = vand.u32 2147483647, %v196
          %vm207 = vcmp.eq.f32.partialorder %v206, 8.507059e+37
          %v208 = vand.u32 %v196, 2147483648
          %v209 = vor.u32 1.1754944e-38, %v208
          %v210 = vsel %vm207, %v209, %v205
          %v211 = vmul.f32 %v193, %v210
          %v212 = vsel %vm176, 1, 0
          %vm213 = vcmp.eq.s32.totalorder %v212, 1
          %v214 = vsel %vm213, %v211, 0.0
          %215 = vst [vmem:[%s165] sm:$0xff] %v214
        $region32: #{tpu_custom_call.1} parent=23 // pred_fallthru
          _
        %p216 = scmp.ge.s32.totalorder %s168, %s166
        // Predicated region
        $region33: #{tpu_custom_call.1} parent=23 // pred_check
          %p217 = pneg %p216
        $region34: #{tpu_custom_call.1} parent=23 // pred_check_branch
          %219 = sbr.rel (%p217) target = $region36
        $region35: #{tpu_custom_call.1} parent=23 // pred_region
          %220 = vst [vmem:[%s165] sm:$0xff] 0.0
        $region36: #{tpu_custom_call.1} parent=23 // pred_fallthru
          _
        %s221 = sand.u32 %s83, 1
        %s222 = scalar_lea.sflag [#allocation7], %s221
        %s223 = sand.u32 %s83, 1
        %s224 = smul.addr %s223, 8
        %s225 = scalar_lea.vmem [#allocation8], %s224
        // Predicated region
        $region37: #{tpu_custom_call.1} parent=23 // pred_check
          %p226 = pneg %p93
        $region38: #{tpu_custom_call.1} parent=23 // pred_check_branch
          %228 = sbr.rel (%p226) target = $region40
        $region39: #{tpu_custom_call.1} parent=23 // pred_region
          %230 = vsyncadd %s222, 0
          %s231 = sadd.s32 %s38, %s37
          %s232 = smul.addr %s231, 8
          %s233 = scalar_lea.hbm %s3, %s232
          %s235 = sshll.u32 %s225, 4
          %s236 = int_to_ptr.vmem [resolvable:$true] %s235
          %s237 = sshll.u32 %s233, 4
          %s238 = int_to_ptr.hbm [resolvable:$true] %s237
          %240 = dma.vmem_to_hbm [thread:$0]  %s236, 128, %s238, %s222
        $region40: #{tpu_custom_call.1} parent=23 // pred_fallthru
          _
      $region24: #{tpu_custom_call.1} parent=5 // pred_fallthru
        _
      %p241 = scmp.le.s32.totalorder 2, %s28
      // Predicated region
      $region41: #{tpu_custom_call.1} parent=5 // pred_check
        %p242 = pneg %p241
      $region42: #{tpu_custom_call.1} parent=5 // pred_check_branch
        %244 = sbr.rel (%p242) target = $region44
      $region43: #{tpu_custom_call.1} parent=5 // pred_region
        %s245 = ssub.s32 %s28, 2
        // Predicated region
        $region45: #{tpu_custom_call.1} parent=43 // pred_check
          %p246 = pneg %p99
        $region46: #{tpu_custom_call.1} parent=43 // pred_check_branch
          %248 = sbr.rel (%p246) target = $region48
        $region47: #{tpu_custom_call.1} parent=43 // pred_region
          %s249 = sand.u32 %s84, 1
          %s250 = scalar_lea.sflag [#allocation7], %s249
          %s251 = sand.u32 %s84, 1
          %s252 = smul.addr %s251, 8
          %s253 = scalar_lea.vmem [#allocation8], %s252
          %255 = dma.done %s250, 128
        $region48: #{tpu_custom_call.1} parent=43 // pred_fallthru
          _
      $region44: #{tpu_custom_call.1} parent=5 // pred_fallthru
        _
    $region6: #{tpu_custom_call.1} parent=1 // loop_footer
      %s32 = sadd.s32 1, %s28
    $region7: #{tpu_custom_call.1} parent=1 // loop_footer_branch
      %27 = sbr.rel target = $region3
    $region8: #{tpu_custom_call.1} parent=1 // loop_exit
      _
    %256 = vsyncpa [#allocation6], 1
    %s257 = scalar_lea.sflag [#allocation6], 1
    %258 = vsyncpa %s257, 1
    %259 = vsyncpa [#allocation7], 1
    %s260 = scalar_lea.sflag [#allocation7], 1
    %261 = vsyncpa %s260, 1

</llo_original>
